<compile_context>
chip_gen: v7x
topology: tpu7x:2x2x1
jax: 0.10.0
libtpu: 0.0.40
codegen_flags: <defaults>
</compile_context>

<pallas_src>
import functools

import numpy as np
import jax
import jax.numpy as jnp
from jax.experimental import pallas as pl
from jax.experimental.pallas import tpu as pltpu


# ----------------------------------------------------------------------------
# Constant-matrix construction (host-side, cached per sequence length)
# ----------------------------------------------------------------------------
def build_interp1d_matrix(N, M):
    """Linear map T (M, N) reproducing Interp1d() on the uniform grids
    x = arange(1..N)/(N+1), xnew = arange(1..M)/(M+1) (incl. the eps in slope)."""
    x = np.arange(1, N + 1, dtype=np.float64) / (N + 1)
    xnew = np.arange(1, M + 1, dtype=np.float64) / (M + 1)
    T = np.zeros((M, N), dtype=np.float32)
    if N == 1:
        T[:, 0] = 1.0
        return T
    ind = np.searchsorted(x, xnew, side="left") - 1
    ind = np.clip(ind, 0, N - 2)
    eps = float(np.finfo(np.float32).eps)
    dx = x[ind + 1] - x[ind]
    w = (xnew - x[ind]) / (eps + dx)
    T[np.arange(M), ind] = (1.0 - w).astype(np.float32)
    T[np.arange(M), ind + 1] += w.astype(np.float32)
    return T


def build_plan_interp_matrix(M, N):
    """Exact replica of the PyTorch `interp(M, N)` helper -> (N, M) matrix."""
    x_src = np.linspace(0.0, 1.0, M)
    x_tgt = np.linspace(0.0, 1.0, N)
    A = np.zeros((N, M), dtype=np.float32)
    for i in range(N):
        for j in range(M - 1):
            if x_src[j] <= x_tgt[i] <= x_src[j + 1]:
                wr = (x_tgt[i] - x_src[j]) / (x_src[j + 1] - x_src[j])
                A[i, j] = 1.0 - wr
                A[i, j + 1] = wr
                break
    return A


# ----------------------------------------------------------------------------
# Pallas kernels
# ----------------------------------------------------------------------------
def _slice_kernel(x_ref, w_ref, o_ref):
    x = x_ref[0]                                   # (tn, d)
    w = w_ref[...]                                 # (L, d)
    o_ref[0] = jax.lax.dot_general(
        w, x, (((1,), (1,)), ((), ())), preferred_element_type=jnp.float32)


def pallas_slices(X, W, *, seq_tile=1024):
    """Xslices in (B, L, N) layout: out[b, l, n] = sum_d X[b, n, d] * W[l, d]."""
    B, N, d = X.shape
    L = W.shape[0]
    # Lane-dense sequence tiles.  128-aligned N gets pipelined 1024-wide tiles
    # (the boundary tile, if any, is masked); unaligned N falls back to one
    # full-length block (the small-N path used by the self-test below).
    tn = min(seq_tile, N) if N % 128 == 0 else N
    nt = pl.cdiv(N, tn)
    return pl.pallas_call(
        _slice_kernel,
        out_shape=jax.ShapeDtypeStruct((B, L, N), jnp.float32),
        grid=(B, nt),
        in_specs=[pl.BlockSpec((1, tn, d), lambda b, j: (b, j, 0)),
                  pl.BlockSpec((L, d), lambda b, j: (0, 0))],       # W resident
        out_specs=pl.BlockSpec((1, L, tn), lambda b, j: (b, 0, j)),
        compiler_params=pltpu.CompilerParams(
            dimension_semantics=("parallel", "parallel")),
    )(X, W)


def _matmul_kernel(a_ref, b_ref, o_ref):
    o_ref[...] = jnp.dot(a_ref[...], b_ref[...],
                         preferred_element_type=jnp.float32)


def pallas_matmul(a, b, *, tile_m=256):
    """Row-tiled (m, k) @ (k, n) -> (m, n) with the (small) rhs resident.
    Used for Rslices = W @ reference^T and the batched interp matmul."""
    m, k = a.shape
    n = b.shape[1]
    tm = tile_m if (m > tile_m and m % 8 == 0) else m
    return pl.pallas_call(
        _matmul_kernel,
        out_shape=jax.ShapeDtypeStruct((m, n), jnp.float32),
        grid=(pl.cdiv(m, tm),),
        in_specs=[pl.BlockSpec((tm, k), lambda i: (i, 0)),
                  pl.BlockSpec((k, n), lambda i: (0, 0))],
        out_specs=pl.BlockSpec((tm, n), lambda i: (i, 0)),
        compiler_params=pltpu.CompilerParams(
            dimension_semantics=("parallel",)),
    )(a, b)


def _plan_prep_kernel(rs_ref, ra_ref, arev_ref, o_ref, *, inv_tau):
    rs = rs_ref[0]                                 # (1, M) reference slice scores
    ra = ra_ref[0]                                 # (M, 1) ascending-sorted scores
    dr = rs - ra                                   # [i, j] = scores[j] - sorted[i]
    # max over j of -(dr^2)/tau is exactly 0 (every sorted value is a score),
    # so exp() is numerically stable without the usual max subtraction.
    e = jnp.exp(-(dr * dr) * inv_tau)
    pr = e / jnp.sum(e, axis=-1, keepdims=True)    # exact recip: one-shot prep
    o_ref[0] = jnp.dot(arev_ref[...], pr, preferred_element_type=jnp.float32)


def pallas_plan_prep(Rslices_t, Rasc_t, A_rev, tau):
    """Apr[l] = A_rev @ SoftSort(Rslices[:, l]), computed once -> (L, N, M).
    Kept per-slice (grid=(L,)) so one-shot VMEM stays O(N*M) at any size."""
    L, M = Rslices_t.shape
    N = A_rev.shape[0]
    kern = functools.partial(_plan_prep_kernel, inv_tau=1.0 / float(tau))
    return pl.pallas_call(
        kern,
        out_shape=jax.ShapeDtypeStruct((L, N, M), jnp.float32),
        grid=(L,),
        in_specs=[pl.BlockSpec((1, 1, M), lambda l: (l, 0, 0)),
                  pl.BlockSpec((1, M, 1), lambda l: (l, 0, 0)),
                  pl.BlockSpec((N, M), lambda l: (0, 0))],
        out_specs=pl.BlockSpec((1, N, M), lambda l: (l, 0, 0)),
        compiler_params=pltpu.CompilerParams(
            dimension_semantics=("parallel",)),
    )(Rslices_t[:, None, :], Rasc_t[:, :, None], A_rev)


def _dist_kernel(x_ref, rt_ref, r2_ref, sc_ref, asc_ref, apr_ref,
                 dv_ref, cost_ref, *, inv_tau, inv_n):
    l = pl.program_id(1)

    # ---- once per batch element (l == 0): squared cdist(X[b], reference) ----
    # Stored as a bf16 VMEM scratch (only consumed as an MXU operand below) and
    # reused for all L slices of this batch element (L is the inner grid axis).
    @pl.when(l == 0)
    def _():
        x = x_ref[0]                                       # (N, d)
        x2 = jnp.sum(x * x, axis=1, keepdims=True)         # (N, 1)
        xr = jnp.dot(x, rt_ref[...], preferred_element_type=jnp.float32)
        c = jnp.maximum(x2 + r2_ref[...] - 2.0 * xr, 0.0)  # clamp fp cancellation
        cost_ref[...] = c.astype(cost_ref.dtype)
        dv_ref[...] = jnp.zeros_like(dv_ref)

    # ---- SoftSort of X[b, :, l] (one slice per grid step) --------------------
    sc = sc_ref[0]                                 # (1, N) slice scores (row)
    asc = asc_ref[0]                               # (N, 1) ascending-sorted (col)
    dx = sc - asc                                  # (N, N): scores[n] - sorted[i]
    e = jnp.exp(-(dx * dx) * inv_tau)              # max arg is exactly 0 -> stable
    # TODO(synk): on v6e/v7x the exp could run in bf16 on the EUP; kept f32 for
    # v5e compatibility and cross-check accuracy.
    px = e * pl.reciprocal(jnp.sum(e, axis=-1, keepdims=True), approx=True)

    # ---- transport contraction (bf16 MXU, no broadcast of cost):
    #      dist = sqrt( sum_{i,m} (P_x @ cost)[i,m] * (A @ P_r)[i,m] / N )
    t1 = jnp.dot(px.astype(jnp.bfloat16), cost_ref[...],
                 preferred_element_type=jnp.float32)        # (N, M)
    prod = t1 * apr_ref[0]                                  # (N, M) f32
    s = jnp.sum(jnp.sum(prod, axis=1, keepdims=True), axis=0, keepdims=True)
    dist = jnp.sqrt(jnp.maximum(s * inv_n, 0.0))            # (1, 1)

    # lane-dense (1, 1, L) output block; write lane l of batch row b
    lane = jax.lax.broadcasted_iota(jnp.int32, dv_ref.shape, 2)
    dv_ref[...] = jnp.where(lane == l, dist, dv_ref[...])


def pallas_swe_distances(X, reference_t, ref_sq, Xslices_t, Xasc_t, Apr, tau):
    """Per-(batch, slice) Wasserstein distances -> (B, L)."""
    B, N, d = X.shape
    L = Xslices_t.shape[1]
    M = reference_t.shape[1]
    # Lane-dense row view of the raw slices and a contiguous column view of the
    # ascending-sorted slices (free reshapes: no transposed HBM reads, and the
    # block last dims equal the array last dims so they lower cleanly).
    sc_rows = Xslices_t.reshape(B * L, 1, N)
    asc_cols = Xasc_t.reshape(B * L, N, 1)
    kern = functools.partial(_dist_kernel, inv_tau=1.0 / float(tau),
                             inv_n=1.0 / float(N))
    dv = pl.pallas_call(
        kern,
        out_shape=jax.ShapeDtypeStruct((B, 1, L), jnp.float32),
        grid=(B, L),
        in_specs=[pl.BlockSpec((1, N, d), lambda b, l: (b, 0, 0)),
                  pl.BlockSpec((d, M), lambda b, l: (0, 0)),      # resident
                  pl.BlockSpec((1, M), lambda b, l: (0, 0)),      # resident
                  pl.BlockSpec((1, 1, N), lambda b, l: (b * L + l, 0, 0)),
                  pl.BlockSpec((1, N, 1), lambda b, l: (b * L + l, 0, 0)),
                  pl.BlockSpec((1, N, M), lambda b, l: (l, 0, 0))],  # Apr per slice
        out_specs=pl.BlockSpec((1, 1, L), lambda b, l: (b, 0, 0)),
        scratch_shapes=[pltpu.VMEM((N, M), jnp.bfloat16)],           # cdist^2
        compiler_params=pltpu.CompilerParams(
            dimension_semantics=("parallel", "arbitrary"),
            vmem_limit_bytes=48 * 1024 * 1024),   # safe on v5e/v6e/v7x
    )(X, reference_t, ref_sq, sc_rows, asc_cols, Apr)
    return dv[:, 0, :]


# ----------------------------------------------------------------------------
# Module wrapper
# ----------------------------------------------------------------------------
class SWEPoolingPallas:
    def __init__(self, d_in, num_slices, num_ref_points, tau_softsort=1.0, key=None):
        self.d_in = d_in
        self.num_slices = num_slices
        self.num_ref_points = num_ref_points
        self.tau = float(tau_softsort)
        key = jax.random.PRNGKey(0) if key is None else key
        # theta = weight_norm(Linear(d_in, num_slices), dim=0) with weight_g == 1:
        # effective weight W[l] = v[l] / ||v[l]||, v ~ Normal(0, 1).
        v = jax.random.normal(key, (num_slices, d_in), dtype=jnp.float32)
        self.W = v / jnp.linalg.norm(v, axis=1, keepdims=True)          # (L, d_in)
        ref = jnp.linspace(-1.0, 1.0, num_ref_points, dtype=jnp.float32)[:, None]
        self.reference = jnp.tile(ref, (1, d_in))                        # (M, d_in)
        # Batch-invariant constants hoisted out of the forward pass.
        self.reference_t = jnp.transpose(self.reference)                 # (d_in, M)
        self.ref_sq = jnp.sum(self.reference * self.reference, axis=1)[None, :]
        self._interp_cache = {}                                          # keyed by N

    def _interp_mats(self, N):
        """(T^T, A_rev) interpolation operators, cached per sequence length."""
        if N not in self._interp_cache:
            M = self.num_ref_points
            T_t = jnp.asarray(build_interp1d_matrix(N, M).T)             # (N, M)
            A = build_plan_interp_matrix(M, N)                           # (N, M)
            # Row/col reversed A lets every kernel work on ascending sorts while
            # remaining algebraically identical to the descending-sort SoftSort.
            A_rev = jnp.asarray(np.ascontiguousarray(A[::-1, ::-1]))
            self._interp_cache[N] = (T_t, A_rev)
        return self._interp_cache[N]

    def __call__(self, X):
        # Equivalent to SWE_Pooling.forward(X, mask=ones(B, N)).
        # TODO(synk): the masked / variable-length branch (top-2 + cumsum x-shift
        # trick, per-length interp matrices) is not implemented.
        B, N, _ = X.shape
        L, M = self.num_slices, self.num_ref_points
        T_t, A_rev = self._interp_mats(N)

        # --- slicing matmuls (Pallas) -----------------------------------------
        Xslices_t = pallas_slices(X, self.W)                             # (B, L, N)
        Rslices_t = pallas_matmul(self.W, self.reference_t)              # (L, M)

        # --- sorts stay in JAX glue (no clean Mosaic sort lowering) -----------
        Xasc_t = jnp.sort(Xslices_t, axis=-1)                            # ascending
        Rasc_t = jnp.sort(Rslices_t, axis=-1)
        Rind = jnp.argsort(Rslices_t, axis=-1)                           # (L, M)

        # --- per-slice reference transport prep, computed once ----------------
        Apr = pallas_plan_prep(Rslices_t, Rasc_t, A_rev, self.tau)       # (L, N, M)

        # --- interpolation embedding: one batched (B*L, N) @ (N, M) matmul ----
        Xinterp = pallas_matmul(Xasc_t.reshape(B * L, N), T_t).reshape(B, L, M)

        # --- fused per-(batch, slice) kernel: cdist + SoftSort + distances ----
        dvals = pallas_swe_distances(X, self.reference_t, self.ref_sq,
                                     Xslices_t, Xasc_t, Apr, self.tau)   # (B, L)

        # --- tiny glue: reference-order gather, subtraction, batch mean -------
        gathered = jnp.take_along_axis(
            Xinterp, jnp.broadcast_to(Rind[None], (B, L, M)), axis=-1)
        embeddings = (Rslices_t[None] - gathered).reshape(B, L * M)
        dists = jnp.mean(dvals, axis=0)
        return embeddings, dists


# ----------------------------------------------------------------------------
# Pure-JAX reference (original descending-sort formulation) for cross-check
# ----------------------------------------------------------------------------
def reference_forward(X, W, reference, T_interp, A, tau):
    B, N, _ = X.shape
    L = W.shape[0]
    M = reference.shape[0]
    Xslices = jnp.einsum("bnd,ld->bnl", X, W)
    Rslices = reference @ jnp.transpose(W)
    Xsorted = jnp.sort(Xslices, axis=1)
    Xinterp = jnp.einsum("mn,bnl->bml", T_interp, Xsorted)
    Rind = jnp.argsort(Rslices, axis=0)
    gathered = jnp.take_along_axis(
        Xinterp, jnp.broadcast_to(Rind[None], (B, M, L)), axis=1)
    emb = jnp.transpose(Rslices[None] - gathered, (0, 2, 1)).reshape(B, -1)
    cost = jnp.sum((X[:, :, None, :] - reference[None, None, :, :]) ** 2, axis=-1)

    def softsort(scores):
        srt = jnp.sort(scores)[::-1]
        diff = scores[None, :] - srt[:, None]
        return jax.nn.softmax(-(diff ** 2) / tau, axis=-1)

    dists = []
    for l in range(L):
        pr = softsort(Rslices[:, l])
        vals = []
        for b in range(B):
            px = softsort(Xslices[b, :, l])
            plan = px.T @ A @ pr / N
            vals.append(jnp.sqrt(jnp.sum(cost[b] * plan)))
        dists.append(jnp.mean(jnp.stack(vals)))
    return emb, jnp.stack(dists)


if __name__ == "__main__":
    key = jax.random.PRNGKey(0)
    k_param, k_x = jax.random.split(key)

    B, N, d_in = 2, 12, 8
    num_slices, num_ref_points = 4, 6

    pool = SWEPoolingPallas(d_in, num_slices, num_ref_points,
                            tau_softsort=1.0, key=k_param)
    X = jax.random.normal(k_x, (B, N, d_in), dtype=jnp.float32)

    emb, dists = pool(X)
    emb, dists = jax.block_until_ready((emb, dists))

    assert emb.shape == (B, num_ref_points * num_slices)
    assert dists.shape == (num_slices,)
    assert bool(jnp.all(jnp.isfinite(emb))) and bool(jnp.all(jnp.isfinite(dists)))

    # sanity check against a pure-JAX reference of the same math (original
    # descending-sort formulation with the un-reversed A; also validates the
    # reversed-A / ascending-sort reformulation and bf16 MXU casts used inside
    # the kernels).
    T_interp = jnp.asarray(build_interp1d_matrix(N, num_ref_points))
    A = jnp.asarray(build_plan_interp_matrix(num_ref_points, N))
    emb_ref, dists_ref = reference_forward(X, pool.W, pool.reference,
                                           T_interp, A, pool.tau)
    np.testing.assert_allclose(np.asarray(emb), np.asarray(emb_ref),
                               rtol=5e-2, atol=5e-2)
    np.testing.assert_allclose(np.asarray(dists), np.asarray(dists_ref),
                               rtol=5e-2, atol=5e-2)

    print("KERNEL_OK")
</pallas_src>

<mosaic_0001>
module attributes {stable_mosaic.version = 11 : i64} {
  func.func @_slice_kernel(%arg0: i32, %arg1: i32, %arg2: memref<1x12x8xf32, #tpu.memory_space<vmem>>, %arg3: memref<4x8xf32, #tpu.memory_space<vmem>>, %arg4: memref<1x4x12xf32, #tpu.memory_space<vmem>>) attributes {dimension_semantics = [#tpu.dimension_semantics<parallel>, #tpu.dimension_semantics<parallel>], iteration_bounds = array<i64: 2, 1>, scalar_prefetch = 0 : i64, scratch_operands = 0 : i64, tpu.core_type = #tpu.core_type<tc>, window_params = [{transform_indices = @transform_0, window_bounds = array<i64: 1, 12, 8>}, {pipeline_mode = #tpu.pipeline_mode<synchronous>, transform_indices = @transform_1, window_bounds = array<i64: 4, 8>}, {transform_indices = @transform_2, window_bounds = array<i64: 1, 4, 12>}]} {
    %c0 = arith.constant 0 : index
    %c0_0 = arith.constant 0 : index
    %c0_1 = arith.constant 0 : index
    %0 = vector.load %arg2[%c0, %c0_0, %c0_1] : memref<1x12x8xf32, #tpu.memory_space<vmem>>, vector<1x12x8xf32>
    %1 = vector.shape_cast %0 : vector<1x12x8xf32> to vector<12x8xf32>
    %c0_2 = arith.constant 0 : index
    %c0_3 = arith.constant 0 : index
    %2 = vector.load %arg3[%c0_2, %c0_3] : memref<4x8xf32, #tpu.memory_space<vmem>>, vector<4x8xf32>
    %cst = arith.constant dense<0.000000e+00> : vector<4x12xf32>
    %3 = tpu.matmul %2, %1, %cst {dimension_numbers = #tpu.dot_dimension_numbers<[1], [1], [0], [0], [0, 0, 1, 0], [], []>} : vector<4x8xf32>, vector<12x8xf32>, vector<4x12xf32> -> vector<4x12xf32>
    %c0_4 = arith.constant 0 : index
    %c0_5 = arith.constant 0 : index
    %c0_6 = arith.constant 0 : index
    %4 = vector.load %arg4[%c0_4, %c0_5, %c0_6] : memref<1x4x12xf32, #tpu.memory_space<vmem>>, vector<1x4x12xf32>
    %5 = vector.shape_cast %4 : vector<1x4x12xf32> to vector<4x12xf32>
    %6 = vector.shape_cast %3 : vector<4x12xf32> to vector<1x4x12xf32>
    tpu.vector_store %arg4[%c0_4, %c0_5, %c0_6], %6 {strides = array<i32>} : memref<1x4x12xf32, #tpu.memory_space<vmem>>, vector<1x4x12xf32>,
    return
  }
  func.func @transform_0(%arg0: i32, %arg1: i32) -> (i32, i32, i32) {
    %c0_i32 = arith.constant 0 : i32
    %c0_i32_0 = arith.constant 0 : i32
    return %arg0, %arg1, %c0_i32 : i32, i32, i32
  }
  func.func @transform_1(%arg0: i32, %arg1: i32) -> (i32, i32) {
    %c0_i32 = arith.constant 0 : i32
    %c0_i32_0 = arith.constant 0 : i32
    %c0_i32_1 = arith.constant 0 : i32
    return %c0_i32, %c0_i32_0 : i32, i32
  }
  func.func @transform_2(%arg0: i32, %arg1: i32) -> (i32, i32, i32) {
    %c0_i32 = arith.constant 0 : i32
    %c0_i32_0 = arith.constant 0 : i32
    return %arg0, %c0_i32, %arg1 : i32, i32, i32
  }
}

</mosaic_0001>

<llo_original>
// kernel: tpu_custom_call.1
$region0: #{tpu_custom_call.1}
  #allocation0 [shape = 'u32[]', space=smem, size = 0x4, offset = 0x4, fixed_abs, tag = 'smem constant byte address 0x4 - core index']
  #allocation1 [shape = 'u32[144,128]{1,0:T(1,128)}', space=vmem, size = 0x12000, scoped, tag = 'internal scratch']
  %s0 = inlined_call_operand.vmem [shape: f32[2,12,8], index: 0, kind: input, shape index: {}]
  %s1 = inlined_call_operand.vmem [shape: f32[4,8], index: 1, kind: input, shape index: {}]
  %s2 = inlined_call_operand.hbm [shape: f32[2,4,12], index: 2, kind: output, shape index: {}]
  %s3 = sld [smem:[#allocation0]]
  $region41: #{tpu_custom_call.1} parent=0
    _
  %s5 = ssub.s32 1, %s3
  %s6 = scalar_select 0, %s5, %s3
  $region1: #{tpu_custom_call.1} parent=0
    #allocation2 [shape = 'u8[4096]{0}', space=vmem, size = 0x1000, scoped, tag = 'output window, operand 0']
    #allocation3 [shape = 's32[2]{0}', space=sflag, size = 0x8, scoped, tag = 'scoped memory for tpu_custom_call.1']
    %7 = vsyncpa [#allocation3], 0
    %s8 = scalar_lea.sflag [#allocation3], 1
    %9 = vsyncpa %s8, 0
    loop: start=0, step=1, limit=4
    $region2: #{tpu_custom_call.1} parent=1 // loop_pre_header
      _
    $region3: #{tpu_custom_call.1} parent=1 // loop_header
      %s11 = sphi 0, %s15
      %p12 = scmp.ge.s32.totalorder %s11, 4
      %s18 = sphi 0, %s30
      %s19 = sphi 0, %s26
      %s20 = sphi 0, %s18
      %s21 = sphi 0, %s19
      %s22 = sphi 0, %s20
      %s23 = sphi 0, %s21
      %s35 = sphi 0, %s37
      %s38 = sphi 0, %s35
      %s39 = sphi 0, %s38
      %s55 = sphi 0, %s39
      %s59 = sphi 0, %s59
      %s61 = sphi 0, %s59
      %s62 = sphi 0, %s61
      %s76 = sphi 0, %s62
      %s84 = sphi 0, %s86
      %s87 = sphi 0, %s84
      %s88 = sphi 0, %s87
      %s104 = sphi 0, %s88
    $region4: #{tpu_custom_call.1} parent=1 // loop_header_branch
      %14 = sbr.rel (%p12) target = $region8
    $region5: #{tpu_custom_call.1} parent=1 // loop_body
      %s16 = ssub.s32 %s11, 1
      %s17 = ssub.s32 %s11, 2
      %s24 = sadd.s32 1, %s19
      %p25 = scmp.ge.s32.totalorder %s24, 1
      %s26 = scalar_select %p25, 0, %s24
      %s27 = sadd.s32 1, %s18
      %s28 = scalar_select %p25, %s27, %s18
      %p29 = scmp.ge.s32.totalorder %s28, 2
      %s30 = scalar_select %p29, 0, %s28
      %s31 = ssub.s32 %s18, %s30
      %s32 = ssub.s32 %s19, %s26
      %s33 = sor.u32 %s31, %s32
      %p34 = scmp.eq.s32.totalorder %s33, 0
      %s36 = sadd.s32 %s35, 1
      %s37 = scalar_select %p34, %s35, %s36
      %p40 = pneg %p34
      %p41 = scmp.eq.s32.totalorder %s11, 1
      %p42 = por %p40, %p41
      %p43 = scmp.ne.s32.totalorder %s35, %s38
      %p44 = scmp.eq.s32.totalorder %s11, 0
      %p45 = por %p43, %p44
      %p46 = scmp.ne.s32.totalorder %s35, %s38
      %p47 = scmp.eq.s32.totalorder %s16, 1
      %p48 = por %p46, %p47
      %p49 = scmp.ne.s32.totalorder %s38, %s39
      %p50 = scmp.eq.s32.totalorder %s16, 0
      %p51 = por %p49, %p50
      %p52 = scmp.ne.s32.totalorder %s38, %s39
      %p53 = scmp.eq.s32.totalorder %s17, 1
      %p54 = por %p52, %p53
      %p56 = scmp.ne.s32.totalorder %s39, %s55
      %p57 = scmp.eq.s32.totalorder %s17, 0
      %p58 = por %p56, %p57
      %s60 = sadd.s32 %s59, 1
      %p63 = scmp.eq.s32.totalorder %s11, 1
      %p64 = scmp.ne.s32.totalorder %s59, %s61
      %p65 = scmp.eq.s32.totalorder %s11, 0
      %p66 = por %p64, %p65
      %p67 = scmp.ne.s32.totalorder %s59, %s61
      %p68 = scmp.eq.s32.totalorder %s16, 1
      %p69 = por %p67, %p68
      %p70 = scmp.ne.s32.totalorder %s61, %s62
      %p71 = scmp.eq.s32.totalorder %s16, 0
      %p72 = por %p70, %p71
      %p73 = scmp.ne.s32.totalorder %s61, %s62
      %p74 = scmp.eq.s32.totalorder %s17, 1
      %p75 = por %p73, %p74
      %p77 = scmp.ne.s32.totalorder %s62, %s76
      %p78 = scmp.eq.s32.totalorder %s17, 0
      %p79 = por %p77, %p78
      %s80 = ssub.s32 %s18, %s30
      %s81 = ssub.s32 %s19, %s26
      %s82 = sor.u32 %s80, %s81
      %p83 = scmp.eq.s32.totalorder %s82, 0
      %s85 = sadd.s32 %s84, 1
      %s86 = scalar_select %p83, %s84, %s85
      %p89 = pneg %p83
      %p90 = scmp.eq.s32.totalorder %s11, 1
      %p91 = por %p89, %p90
      %p92 = scmp.ne.s32.totalorder %s84, %s87
      %p93 = scmp.eq.s32.totalorder %s11, 0
      %p94 = por %p92, %p93
      %p95 = scmp.ne.s32.totalorder %s84, %s87
      %p96 = scmp.eq.s32.totalorder %s16, 1
      %p97 = por %p95, %p96
      %p98 = scmp.ne.s32.totalorder %s87, %s88
      %p99 = scmp.eq.s32.totalorder %s16, 0
      %p100 = por %p98, %p99
      %p101 = scmp.ne.s32.totalorder %s87, %s88
      %p102 = scmp.eq.s32.totalorder %s17, 1
      %p103 = por %p101, %p102
      %p105 = scmp.ne.s32.totalorder %s88, %s104
      %p106 = scmp.eq.s32.totalorder %s17, 0
      %p107 = por %p105, %p106
      %p108 = scmp.le.s32.totalorder 1, %s11
      %p109 = scmp.lt.s32.totalorder %s11, 3
      %p110 = pnand %p108, %p109
      %p111 = pneg %p110
      // Predicated region
      $region9: #{tpu_custom_call.1} parent=5 // pred_check
        _
      $region10: #{tpu_custom_call.1} parent=5 // pred_check_branch
        %113 = sbr.rel (%p110) target = $region12
      $region11: #{tpu_custom_call.1} parent=5 // pred_region
        %s114 = ssub.s32 %s11, 1
        // Predicated region
        $region13: #{tpu_custom_call.1} parent=11 // pred_check
          %p115 = pneg %p72
        $region14: #{tpu_custom_call.1} parent=11 // pred_check_branch
          %117 = sbr.rel (%p115) target = $region16
        $region15: #{tpu_custom_call.1} parent=11 // pred_region
          _
        $region16: #{tpu_custom_call.1} parent=11 // pred_fallthru
          _
      $region12: #{tpu_custom_call.1} parent=5 // pred_fallthru
        _
      %p118 = scmp.lt.s32.totalorder %s11, 2
      // Predicated region
      $region17: #{tpu_custom_call.1} parent=5 // pred_check
        %p119 = pneg %p118
      $region18: #{tpu_custom_call.1} parent=5 // pred_check_branch
        %121 = sbr.rel (%p119) target = $region20
      $region19: #{tpu_custom_call.1} parent=5 // pred_region
        // Predicated region
        $region21: #{tpu_custom_call.1} parent=19 // pred_check
          %p122 = pneg %p45
        $region22: #{tpu_custom_call.1} parent=19 // pred_check_branch
          %124 = sbr.rel (%p122) target = $region24
        $region23: #{tpu_custom_call.1} parent=19 // pred_region
          %s125 = smul.u32 2, %s19
          %p126 = scmp.lt.s32.totalorder %s18, 1
          %s127 = scalar_select %p126, %s18, 1
          %p128 = scmp.lt.s32.totalorder %s125, 1
          %s129 = scalar_select %p128, %s125, 1
          %s130 = smul.addr %s127, 2
          %s131 = sadd.s32 %s129, %s130
          %s132 = smul.addr %s131, 8
          %s133 = scalar_lea.vmem %s0, %s132
          %s134 = smul.u32 2, %s19
        $region24: #{tpu_custom_call.1} parent=19 // pred_fallthru
          _
      $region20: #{tpu_custom_call.1} parent=5 // pred_fallthru
        _
      %p135 = scmp.le.s32.totalorder 1, %s11
      %p136 = scmp.lt.s32.totalorder %s11, 3
      %p137 = pnand %p135, %p136
      %p138 = pneg %p137
      // Predicated region
      $region25: #{tpu_custom_call.1} parent=5 // pred_check
        _
      $region26: #{tpu_custom_call.1} parent=5 // pred_check_branch
        %140 = sbr.rel (%p137) target = $region28
      $region27: #{tpu_custom_call.1} parent=5 // pred_region
        %s141 = ssub.s32 %s11, 1
        %s142 = smul.u32 2, %s21
        %p143 = scmp.lt.s32.totalorder %s20, 1
        %s144 = scalar_select %p143, %s20, 1
        %p145 = scmp.lt.s32.totalorder %s142, 1
        %s146 = scalar_select %p145, %s142, 1
        %s147 = smul.addr %s144, 2
        %s148 = sadd.s32 %s146, %s147
        %s149 = smul.addr %s148, 8
        %s150 = scalar_lea.vmem %s0, %s149
        %p151 = pneg %p51
        %p152 = pneg %p48
        %p153 = pneg %p72
        %p154 = pneg %p69
        %p155 = pneg %p100
        %p156 = pneg %p97
        %s157 = sand.u32 %s87, 1
        %s158 = scalar_lea.sflag [#allocation3], %s157
        %s159 = sand.u32 %s87, 1
        %s160 = smul.addr %s159, 4
        %s161 = scalar_lea.vmem [#allocation2], %s160
        %s162 = smul.u32 2, %s21
        %p163 = scmp.lt.s32.totalorder %s20, 1
        %s164 = scalar_select %p163, %s20, 1
        %p165 = scmp.lt.s32.totalorder %s162, 1
        %s166 = scalar_select %p165, %s162, 1
        %s167 = smul.addr %s164, 2
        %s168 = sadd.s32 %s166, %s167
        %s169 = smul.addr %s168, 8
        %s170 = scalar_lea.vmem %s0, %s169
        %s171 = smul.u32 2, %s21
        %v172 = vld [vmem:[%s170] sm:$0xff]
        %v173 = vld [vmem:[%s170 + $0x8] sm:$0xf]
        %v174 = vld [vmem:[%s1] sm:$0xf]
        %vm175 = vcmask 64512
        %v177 = vsel %vm175, %v174, 0
        %v180 = vsel %vm175, %v172, 0
        %v183 = vsel %vm175, %v173, 0
        %185 = vmatprep.subr.mxu0 0.0
        %186 = vmatpush1.xpose.msra.mxu0 %v180
        %187 = vmatprep.subr.mxu0 0.0
        %188 = vmatpush1.xpose.msra.mxu0 %v183
        %189 = vmatprep.subr.mxu0 0.0
        %190 = vmatpush1.xpose.msra.mxu0 0.0
        %191 = vmatprep.subr.mxu0 0.0
        %192 = vmatpush1.xpose.msra.mxu0 0.0
        %193 = vmatprep.subr.mxu0 0.0
        %194 = vmatpush1.xpose.msra.mxu0 0.0
        %195 = vmatprep.subr.mxu0 0.0
        %196 = vmatpush1.xpose.msra.mxu0 0.0
        %197 = vmatprep.subr.mxu0 0.0
        %198 = vmatpush1.xpose.msra.mxu0 0.0
        %199 = vmatprep.subr.mxu0 0.0
        %200 = vmatpush1.xpose.msra.mxu0 0.0
        %201 = vmatprep.subr.mxu0 0.0
        %202 = vmatpush1.xpose.msra.mxu0 0.0
        %203 = vmatprep.subr.mxu0 0.0
        %204 = vmatpush1.xpose.msra.mxu0 0.0
        %205 = vmatprep.subr.mxu0 0.0
        %206 = vmatpush1.xpose.msra.mxu0 0.0
        %207 = vmatprep.subr.mxu0 0.0
        %208 = vmatpush1.xpose.msra.mxu0 0.0
        %209 = vmatprep.subr.mxu0 0.0
        %210 = vmatpush1.xpose.msra.mxu0 0.0
        %211 = vmatprep.subr.mxu0 0.0
        %212 = vmatpush1.xpose.msra.mxu0 0.0
        %213 = vmatprep.subr.mxu0 0.0
        %214 = vmatpush1.xpose.msra.mxu0 0.0
        %215 = vmatprep.subr.mxu0 0.0
        %216 = vmatpush1.xpose.msra.mxu0 0.0
        %217 = vmatprep.subr.mxu0 0.0
        %218 = vmatpush1.xpose.msra.mxu0 0.0
        %219 = vmatprep.subr.mxu0 0.0
        %220 = vmatpush1.xpose.msra.mxu0 0.0
        %221 = vmatprep.subr.mxu0 0.0
        %222 = vmatpush1.xpose.msra.mxu0 0.0
        %223 = vmatprep.subr.mxu0 0.0
        %224 = vmatpush1.xpose.msra.mxu0 0.0
        %225 = vmatprep.subr.mxu0 0.0
        %226 = vmatpush1.xpose.msra.mxu0 0.0
        %227 = vmatprep.subr.mxu0 0.0
        %228 = vmatpush1.xpose.msra.mxu0 0.0
        %229 = vmatprep.subr.mxu0 0.0
        %230 = vmatpush1.xpose.msra.mxu0 0.0
        %231 = vmatprep.subr.mxu0 0.0
        %232 = vmatpush1.xpose.msra.mxu0 0.0
        %233 = vmatprep.subr.mxu0 0.0
        %234 = vmatpush1.xpose.msra.mxu0 0.0
        %235 = vmatprep.subr.mxu0 0.0
        %236 = vmatpush1.xpose.msra.mxu0 0.0
        %237 = vmatprep.subr.mxu0 0.0
        %238 = vmatpush1.xpose.msra.mxu0 0.0
        %239 = vmatprep.subr.mxu0 0.0
        %240 = vmatpush1.xpose.msra.mxu0 0.0
        %241 = vmatprep.subr.mxu0 0.0
        %242 = vmatpush1.xpose.msra.mxu0 0.0
        %243 = vmatprep.subr.mxu0 0.0
        %244 = vmatpush1.xpose.msra.mxu0 0.0
        %245 = vmatprep.subr.mxu0 0.0
        %246 = vmatpush1.xpose.msra.mxu0 0.0
        %247 = vmatprep.subr.mxu0 0.0
        %248 = vmatpush1.xpose.msra.mxu0 0.0
        %249 = vmatprep.mubr.f32.mxu0 0.0
        %250 = vmatmul.mubr.f32.gmra.mrb[0].mxu0 %v177
        %v251 = vpop.f32.mrb[0].mxu0
        %v252 = vadd.f32 0.0, %v251
        %v253 = vpop.f32.mrb[0].mxu0
        %254 = vdwg.mxu0
        %vm255 = vcmask 93184
        %256 = vst.msk [vmem:[%s161] sm:$0xf] %vm255, %v252
        %s257 = sand.u32 %s87, 1
        %s258 = scalar_lea.sflag [#allocation3], %s257
        %s259 = sand.u32 %s87, 1
        %s260 = smul.addr %s259, 4
        %s261 = scalar_lea.vmem [#allocation2], %s260
        // Predicated region
        $region29: #{tpu_custom_call.1} parent=27 // pred_check
          %p262 = pneg %p97
        $region30: #{tpu_custom_call.1} parent=27 // pred_check_branch
          %264 = sbr.rel (%p262) target = $region32
        $region31: #{tpu_custom_call.1} parent=27 // pred_region
          %s266 = ssub.s32 64, 64
          %267 = vsyncadd %s258, %s266
          %s268 = sadd.s32 %s21, %s20
          %s269 = smul.addr %s268, 64
          %s270 = scalar_lea.hbm %s2, %s269
          %s272 = sshll.u32 %s261, 4
          %s273 = int_to_ptr.vmem [resolvable:$true] %s272
          %275 = dma.vmem_to_hbm [thread:$0]  %s273, 64, %s270, %s258
        $region32: #{tpu_custom_call.1} parent=27 // pred_fallthru
          _
      $region28: #{tpu_custom_call.1} parent=5 // pred_fallthru
        _
      %p276 = scmp.le.s32.totalorder 2, %s11
      // Predicated region
      $region33: #{tpu_custom_call.1} parent=5 // pred_check
        %p277 = pneg %p276
      $region34: #{tpu_custom_call.1} parent=5 // pred_check_branch
        %279 = sbr.rel (%p277) target = $region36
      $region35: #{tpu_custom_call.1} parent=5 // pred_region
        %s280 = ssub.s32 %s11, 2
        // Predicated region
        $region37: #{tpu_custom_call.1} parent=35 // pred_check
          %p281 = pneg %p103
        $region38: #{tpu_custom_call.1} parent=35 // pred_check_branch
          %283 = sbr.rel (%p281) target = $region40
        $region39: #{tpu_custom_call.1} parent=35 // pred_region
          %s284 = sand.u32 %s88, 1
          %s285 = scalar_lea.sflag [#allocation3], %s284
          %s286 = sand.u32 %s88, 1
          %s287 = smul.addr %s286, 4
          %s288 = scalar_lea.vmem [#allocation2], %s287
          %289 = dma.done %s285, 64
        $region40: #{tpu_custom_call.1} parent=35 // pred_fallthru
          _
      $region36: #{tpu_custom_call.1} parent=5 // pred_fallthru
        _
    $region6: #{tpu_custom_call.1} parent=1 // loop_footer
      %s15 = sadd.s32 1, %s11
    $region7: #{tpu_custom_call.1} parent=1 // loop_footer_branch
      %10 = sbr.rel target = $region3
    $region8: #{tpu_custom_call.1} parent=1 // loop_exit
      _
    %290 = vsyncpa [#allocation3], 1
    %s291 = scalar_lea.sflag [#allocation3], 1
    %292 = vsyncpa %s291, 1

</llo_original>
